<compile_context>
chip_gen: v7x
topology: tpu7x:2x2x1
jax: 0.10.0
libtpu: 0.0.40
codegen_flags: <defaults>
</compile_context>

<pallas_src>
import jax
import jax.numpy as jnp
from jax.experimental import pallas as pl
from jax.experimental.pallas import tpu as pltpu

_HEAD_HIDDEN = 256          # hard-coded in the PyTorch module
_LANE = 128                 # TPU lane width
_SUB = 16                   # sublane multiple safe for both f32 and bf16 packing


def _round_up(n, m):
    return (n + m - 1) // m * m


def _cdiv(a, b):
    return -(-a // b)


# --------------------------------------------------------------------------- #
# Kernel: three fused matmuls, all combine logic pre-folded into the weights.
# --------------------------------------------------------------------------- #
def _dueling_dqn_kernel(x_ref, w1_ref, b1_ref, wva_ref, bva_ref, w2_ref, b2_ref,
                        q_ref):
    """One batch tile of the fused dueling-DQN forward pass.

    x_ref   : (TB, S_r)        f32 (cast to compute dtype in-kernel)
    w1_ref  : (S_r, H_pad)     compute dtype
    wva_ref : (H_pad, 512)     [Wv1 | Wa1], compute dtype
    w2_ref  : (512, OUT_PAD)   combine-folded head (cols 0..A-1 hold Q weights)
    biases  : f32, (1, out)
    q_ref   : (TB, OUT_PAD)    compute dtype; cols 0..A-1 hold Q
    """
    cdt = w1_ref.dtype

    # fc1 + ReLU (f32 accumulate, f32 elementwise)
    h = jnp.dot(x_ref[...].astype(cdt), w1_ref[...],
                preferred_element_type=jnp.float32) + b1_ref[...]
    h = jnp.maximum(h, 0.0)

    # fused fc_value | fc_advantages + ReLU  ->  (TB, 512) = [v | a]
    va = jnp.dot(h.astype(cdt), wva_ref[...],
                 preferred_element_type=jnp.float32) + bva_ref[...]
    va = jnp.maximum(va, 0.0)

    # fused, combine-folded heads: out[:, j] = V + A_j - mean_k(A_k) for j < A
    q = jnp.dot(va.astype(cdt), w2_ref[...],
                preferred_element_type=jnp.float32) + b2_ref[...]
    q_ref[...] = q.astype(q_ref.dtype)


# --------------------------------------------------------------------------- #
# Parameter packing (one-time preprocessing, all folds done in f32)
# --------------------------------------------------------------------------- #
def prepare_params(raw, *, compute_dtype=jnp.bfloat16):
    """Pack raw (in,out)-layout params into lane-padded, combine-folded tensors."""
    w1 = raw["w1"]                       # (S, H)
    S, H = w1.shape
    A = raw["wa2"].shape[1]
    assert raw["wv1"].shape[1] == _HEAD_HIDDEN

    S_r = _round_up(S, _SUB)             # only sublane-rounded, NOT 128-padded
    H_pad = _round_up(H, _LANE)
    OUT_PAD = _round_up(A, _LANE)

    # fc1 (zero-padded -> padded h columns are exactly 0 after ReLU)
    W1 = jnp.zeros((S_r, H_pad), jnp.float32).at[:S, :H].set(w1)
    b1 = jnp.zeros((1, H_pad), jnp.float32).at[:, :H].set(raw["b1"].reshape(1, -1))

    # fused value|advantage hidden layer: (H_pad, 512) = [Wv1 | Wa1]
    Wva = (jnp.zeros((H_pad, 2 * _HEAD_HIDDEN), jnp.float32)
           .at[:H, :_HEAD_HIDDEN].set(raw["wv1"])
           .at[:H, _HEAD_HIDDEN:].set(raw["wa1"]))
    bva = jnp.concatenate([raw["bv1"].reshape(1, -1),
                           raw["ba1"].reshape(1, -1)], axis=1)

    # Dueling combine folded into the head weights (in f32, before the cast):
    #   Q[:, j] = v @ wv2  +  a @ (Wa2[:, j] - mean_k Wa2[:, k])
    #             + (bv2 + ba2[j] - mean(ba2))
    wv2 = raw["wv2"].reshape(_HEAD_HIDDEN, 1)
    wa2_centered = raw["wa2"] - jnp.mean(raw["wa2"], axis=1, keepdims=True)
    W2 = (jnp.zeros((2 * _HEAD_HIDDEN, OUT_PAD), jnp.float32)
          .at[:_HEAD_HIDDEN, :A].set(jnp.broadcast_to(wv2, (_HEAD_HIDDEN, A)))
          .at[_HEAD_HIDDEN:, :A].set(wa2_centered))
    b2_cols = (raw["bv2"].reshape(1, 1) + raw["ba2"].reshape(1, -1)
               - jnp.mean(raw["ba2"]))
    b2 = jnp.zeros((1, OUT_PAD), jnp.float32).at[:, :A].set(b2_cols)

    return dict(
        w1=W1.astype(compute_dtype), b1=b1,
        wva=Wva.astype(compute_dtype), bva=bva,
        w2=W2.astype(compute_dtype), b2=b2,
        state_dim=S, action_dim=A,
    )


# --------------------------------------------------------------------------- #
# Wrapper
# --------------------------------------------------------------------------- #
def monte_carlo_dqn_forward(x, packed, *, block_b=4096, out_dtype=None):
    """x: (B, state_dim) float32.  packed: output of prepare_params."""
    S = packed["state_dim"]
    A = packed["action_dim"]
    w1, b1 = packed["w1"], packed["b1"]
    wva, bva = packed["wva"], packed["bva"]
    w2, b2 = packed["w2"], packed["b2"]

    S_r, H_pad = w1.shape
    OUT_PAD = w2.shape[1]
    cdt = w1.dtype
    out_dtype = cdt if out_dtype is None else out_dtype

    B = x.shape[0]
    # Balanced batch tiles; force >=2 grid steps for non-trivial B so the
    # "parallel" batch axis can shard over both v7x TensorCores.
    n_tiles = _cdiv(B, block_b)
    if n_tiles == 1 and B >= 2 * _SUB:
        n_tiles = 2
    TB = _round_up(_cdiv(B, n_tiles), _SUB)
    B_pad = n_tiles * TB

    if B_pad != B or S_r != S:
        x = jnp.pad(x, ((0, B_pad - B), (0, S_r - S)))

    const_spec = lambda arr: pl.BlockSpec(arr.shape, lambda i: (0, 0))  # VMEM-resident

    weight_bytes = sum(int(packed[k].size) * packed[k].dtype.itemsize
                       for k in ("w1", "b1", "wva", "bva", "w2", "b2"))
    cost = pl.CostEstimate(
        flops=2 * B_pad * (S_r * H_pad + H_pad * 2 * _HEAD_HIDDEN
                           + 2 * _HEAD_HIDDEN * OUT_PAD),
        transcendentals=0,
        bytes_accessed=int(x.size) * x.dtype.itemsize
                       + B_pad * OUT_PAD * jnp.dtype(out_dtype).itemsize
                       + weight_bytes,
    )

    q_pad = pl.pallas_call(
        _dueling_dqn_kernel,
        out_shape=jax.ShapeDtypeStruct((B_pad, OUT_PAD), out_dtype),
        grid=(n_tiles,),
        in_specs=[
            pl.BlockSpec((TB, S_r), lambda i: (i, 0)),     # x: batch-tiled, unpadded lanes
            const_spec(w1), const_spec(b1),
            const_spec(wva), const_spec(bva),
            const_spec(w2), const_spec(b2),
        ],
        out_specs=pl.BlockSpec((TB, OUT_PAD), lambda i: (i, 0)),
        compiler_params=pltpu.CompilerParams(
            dimension_semantics=("parallel",),             # v7x: shard batch over 2 TCs
        ),
        cost_estimate=cost,
    )(x, w1, b1, wva, bva, w2, b2)

    # lane-dense padded slab -> (B, action_dim); Q lives in columns 0..A-1
    return q_pad[:B, :A]


# --------------------------------------------------------------------------- #
# Reference init + plain-JAX references
# --------------------------------------------------------------------------- #
def init_params(key, state_dim, action_dim, hidden_dim):
    """PyTorch-Linear-style init; weights stored transposed (in,out), biases (1,out)."""
    def linear(key, fan_in, fan_out):
        kw, kb = jax.random.split(key)
        bound = 1.0 / jnp.sqrt(fan_in)
        w = jax.random.uniform(kw, (fan_in, fan_out), jnp.float32, -bound, bound)
        b = jax.random.uniform(kb, (1, fan_out), jnp.float32, -bound, bound)
        return w, b

    k1, k2, k3, k4, k5 = jax.random.split(key, 5)
    w1, b1 = linear(k1, state_dim, hidden_dim)            # fc1
    wv1, bv1 = linear(k2, hidden_dim, _HEAD_HIDDEN)       # fc_value
    wv2, bv2 = linear(k3, _HEAD_HIDDEN, 1)                # value
    wa1, ba1 = linear(k4, hidden_dim, _HEAD_HIDDEN)       # fc_advantages
    wa2, ba2 = linear(k5, _HEAD_HIDDEN, action_dim)       # advantages
    return dict(w1=w1, b1=b1, wv1=wv1, bv1=bv1, wv2=wv2, bv2=bv2,
                wa1=wa1, ba1=ba1, wa2=wa2, ba2=ba2)


def reference_forward(x, p):
    """Exact forward of the PyTorch module (dueling branch), full f32."""
    h = jax.nn.relu(x @ p["w1"] + p["b1"])
    v = jax.nn.relu(h @ p["wv1"] + p["bv1"])
    V = v @ p["wv2"] + p["bv2"]
    a = jax.nn.relu(h @ p["wa1"] + p["ba1"])
    A = a @ p["wa2"] + p["ba2"]
    return V + A - jnp.mean(A, axis=1, keepdims=True)


def packed_reference(x, packed):
    """Apples-to-apples JAX reference using the *packed* weights and dtypes."""
    S = packed["state_dim"]
    cdt = packed["w1"].dtype
    S_r = packed["w1"].shape[0]
    xp = jnp.pad(x, ((0, 0), (0, S_r - S)))
    h = jnp.maximum(jnp.dot(xp.astype(cdt), packed["w1"],
                            preferred_element_type=jnp.float32) + packed["b1"], 0.0)
    va = jnp.maximum(jnp.dot(h.astype(cdt), packed["wva"],
                             preferred_element_type=jnp.float32) + packed["bva"], 0.0)
    q = jnp.dot(va.astype(cdt), packed["w2"],
                preferred_element_type=jnp.float32) + packed["b2"]
    return q[:, :packed["action_dim"]]


# --------------------------------------------------------------------------- #
if __name__ == "__main__":
    # Small shapes consistent with the module: batch=2, state_dim=16, action_dim=8,
    # hidden_dim=32 (the 256-wide dueling-head hidden size is fixed by the module).
    B, STATE_DIM, ACTION_DIM, HIDDEN_DIM = 2, 16, 8, 32

    key = jax.random.PRNGKey(0)
    kx, kp, kx2 = jax.random.split(key, 3)
    x = jax.random.normal(kx, (B, STATE_DIM), jnp.float32)
    raw = init_params(kp, STATE_DIM, ACTION_DIM, HIDDEN_DIM)

    # ---- f32 path: tight correctness check (kernel + combine-fold) vs reference
    packed_f32 = prepare_params(raw, compute_dtype=jnp.float32)
    q_f32 = jax.block_until_ready(monte_carlo_dqn_forward(x, packed_f32))
    q_ref = reference_forward(x, raw)
    assert q_f32.shape == (B, ACTION_DIM)
    assert jnp.allclose(q_f32, q_ref, atol=1e-3, rtol=1e-3), \
        "Pallas f32 output mismatch vs reference"

    # ---- multi-tile f32 path: exercises balanced batch tiling + batch padding ----
    x_big = jax.random.normal(kx2, (300, STATE_DIM), jnp.float32)
    q_big = jax.block_until_ready(
        monte_carlo_dqn_forward(x_big, packed_f32, block_b=128))
    assert q_big.shape == (300, ACTION_DIM)
    assert jnp.allclose(q_big, reference_forward(x_big, raw), atol=1e-3, rtol=1e-3), \
        "Pallas f32 multi-tile output mismatch vs reference"

    # ---- bf16 path (production default): apples-to-apples packed-bf16 reference --
    packed_bf16 = prepare_params(raw, compute_dtype=jnp.bfloat16)
    q_bf16 = jax.block_until_ready(monte_carlo_dqn_forward(x, packed_bf16))
    q_pref = packed_reference(x, packed_bf16)
    assert q_bf16.dtype == jnp.bfloat16
    assert jnp.allclose(q_bf16.astype(jnp.float32), q_pref.astype(jnp.float32),
                        atol=1e-2, rtol=1e-2), \
        "Pallas bf16 output mismatch vs packed bf16 reference"

    print("KERNEL_OK")
</pallas_src>

<mosaic_0001>
module attributes {stable_mosaic.version = 11 : i64} {
  func.func @_dueling_dqn_kernel(%arg0: i32, %arg1: memref<16x16xf32, #tpu.memory_space<vmem>>, %arg2: memref<16x128xf32, #tpu.memory_space<vmem>>, %arg3: memref<1x128xf32, #tpu.memory_space<vmem>>, %arg4: memref<128x512xf32, #tpu.memory_space<vmem>>, %arg5: memref<1x512xf32, #tpu.memory_space<vmem>>, %arg6: memref<512x128xf32, #tpu.memory_space<vmem>>, %arg7: memref<1x128xf32, #tpu.memory_space<vmem>>, %arg8: memref<16x128xf32, #tpu.memory_space<vmem>>) attributes {dimension_semantics = [#tpu.dimension_semantics<parallel>], iteration_bounds = array<i64: 1>, scalar_prefetch = 0 : i64, scratch_operands = 0 : i64, tpu.core_type = #tpu.core_type<tc>, window_params = [{transform_indices = @transform_0, window_bounds = array<i64: 16, 16>}, {pipeline_mode = #tpu.pipeline_mode<synchronous>, transform_indices = @transform_1, window_bounds = array<i64: 16, 128>}, {pipeline_mode = #tpu.pipeline_mode<synchronous>, transform_indices = @transform_2, window_bounds = array<i64: 1, 128>}, {pipeline_mode = #tpu.pipeline_mode<synchronous>, transform_indices = @transform_3, window_bounds = array<i64: 128, 512>}, {pipeline_mode = #tpu.pipeline_mode<synchronous>, transform_indices = @transform_4, window_bounds = array<i64: 1, 512>}, {pipeline_mode = #tpu.pipeline_mode<synchronous>, transform_indices = @transform_5, window_bounds = array<i64: 512, 128>}, {pipeline_mode = #tpu.pipeline_mode<synchronous>, transform_indices = @transform_6, window_bounds = array<i64: 1, 128>}, {transform_indices = @transform_7, window_bounds = array<i64: 16, 128>}]} {
    %c0 = arith.constant 0 : index
    %c0_0 = arith.constant 0 : index
    %0 = vector.load %arg1[%c0, %c0_0] : memref<16x16xf32, #tpu.memory_space<vmem>>, vector<16x16xf32>
    %c0_1 = arith.constant 0 : index
    %c0_2 = arith.constant 0 : index
    %1 = vector.load %arg2[%c0_1, %c0_2] : memref<16x128xf32, #tpu.memory_space<vmem>>, vector<16x128xf32>
    %cst = arith.constant dense<0.000000e+00> : vector<16x128xf32>
    %2 = tpu.matmul %0, %1, %cst {dimension_numbers = #tpu.dot_dimension_numbers<[1], [0], [0], [1], [0, 0, 1, 1], [], []>} : vector<16x16xf32>, vector<16x128xf32>, vector<16x128xf32> -> vector<16x128xf32>
    %c0_3 = arith.constant 0 : index
    %c0_4 = arith.constant 0 : index
    %3 = vector.load %arg3[%c0_3, %c0_4] : memref<1x128xf32, #tpu.memory_space<vmem>>, vector<1x128xf32>
    %4 = vector.broadcast %3 : vector<1x128xf32> to vector<16x128xf32>
    %5 = arith.addf %2, %4 : vector<16x128xf32>
    %cst_5 = arith.constant 0.000000e+00 : f32
    %6 = vector.broadcast %cst_5 : f32 to vector<16x128xf32>
    %7 = arith.maximumf %5, %6 : vector<16x128xf32>
    %c0_6 = arith.constant 0 : index
    %c0_7 = arith.constant 0 : index
    %8 = vector.load %arg4[%c0_6, %c0_7] : memref<128x512xf32, #tpu.memory_space<vmem>>, vector<128x512xf32>
    %cst_8 = arith.constant dense<0.000000e+00> : vector<16x512xf32>
    %9 = tpu.matmul %7, %8, %cst_8 {dimension_numbers = #tpu.dot_dimension_numbers<[1], [0], [0], [1], [0, 0, 1, 1], [], []>} : vector<16x128xf32>, vector<128x512xf32>, vector<16x512xf32> -> vector<16x512xf32>
    %c0_9 = arith.constant 0 : index
    %c0_10 = arith.constant 0 : index
    %10 = vector.load %arg5[%c0_9, %c0_10] : memref<1x512xf32, #tpu.memory_space<vmem>>, vector<1x512xf32>
    %11 = vector.broadcast %10 : vector<1x512xf32> to vector<16x512xf32>
    %12 = arith.addf %9, %11 : vector<16x512xf32>
    %cst_11 = arith.constant 0.000000e+00 : f32
    %13 = vector.broadcast %cst_11 : f32 to vector<16x512xf32>
    %14 = arith.maximumf %12, %13 : vector<16x512xf32>
    %c0_12 = arith.constant 0 : index
    %c0_13 = arith.constant 0 : index
    %15 = vector.load %arg6[%c0_12, %c0_13] : memref<512x128xf32, #tpu.memory_space<vmem>>, vector<512x128xf32>
    %cst_14 = arith.constant dense<0.000000e+00> : vector<16x128xf32>
    %16 = tpu.matmul %14, %15, %cst_14 {dimension_numbers = #tpu.dot_dimension_numbers<[1], [0], [0], [1], [0, 0, 1, 1], [], []>} : vector<16x512xf32>, vector<512x128xf32>, vector<16x128xf32> -> vector<16x128xf32>
    %c0_15 = arith.constant 0 : index
    %c0_16 = arith.constant 0 : index
    %17 = vector.load %arg7[%c0_15, %c0_16] : memref<1x128xf32, #tpu.memory_space<vmem>>, vector<1x128xf32>
    %18 = vector.broadcast %17 : vector<1x128xf32> to vector<16x128xf32>
    %19 = arith.addf %16, %18 : vector<16x128xf32>
    %c0_17 = arith.constant 0 : index
    %c0_18 = arith.constant 0 : index
    %20 = vector.load %arg8[%c0_17, %c0_18] : memref<16x128xf32, #tpu.memory_space<vmem>>, vector<16x128xf32>
    tpu.vector_store %arg8[%c0_17, %c0_18], %19 {strides = array<i32>} : memref<16x128xf32, #tpu.memory_space<vmem>>, vector<16x128xf32>,
    return
  }
  func.func @transform_0(%arg0: i32) -> (i32, i32) {
    %c0_i32 = arith.constant 0 : i32
    %c0_i32_0 = arith.constant 0 : i32
    return %arg0, %c0_i32 : i32, i32
  }
  func.func @transform_1(%arg0: i32) -> (i32, i32) {
    %c0_i32 = arith.constant 0 : i32
    %c0_i32_0 = arith.constant 0 : i32
    %c0_i32_1 = arith.constant 0 : i32
    return %c0_i32, %c0_i32_0 : i32, i32
  }
  func.func @transform_2(%arg0: i32) -> (i32, i32) {
    %c0_i32 = arith.constant 0 : i32
    %c0_i32_0 = arith.constant 0 : i32
    %c0_i32_1 = arith.constant 0 : i32
    return %c0_i32, %c0_i32_0 : i32, i32
  }
  func.func @transform_3(%arg0: i32) -> (i32, i32) {
    %c0_i32 = arith.constant 0 : i32
    %c0_i32_0 = arith.constant 0 : i32
    %c0_i32_1 = arith.constant 0 : i32
    return %c0_i32, %c0_i32_0 : i32, i32
  }
  func.func @transform_4(%arg0: i32) -> (i32, i32) {
    %c0_i32 = arith.constant 0 : i32
    %c0_i32_0 = arith.constant 0 : i32
    %c0_i32_1 = arith.constant 0 : i32
    return %c0_i32, %c0_i32_0 : i32, i32
  }
  func.func @transform_5(%arg0: i32) -> (i32, i32) {
    %c0_i32 = arith.constant 0 : i32
    %c0_i32_0 = arith.constant 0 : i32
    %c0_i32_1 = arith.constant 0 : i32
    return %c0_i32, %c0_i32_0 : i32, i32
  }
  func.func @transform_6(%arg0: i32) -> (i32, i32) {
    %c0_i32 = arith.constant 0 : i32
    %c0_i32_0 = arith.constant 0 : i32
    %c0_i32_1 = arith.constant 0 : i32
    return %c0_i32, %c0_i32_0 : i32, i32
  }
  func.func @transform_7(%arg0: i32) -> (i32, i32) {
    %c0_i32 = arith.constant 0 : i32
    %c0_i32_0 = arith.constant 0 : i32
    return %arg0, %c0_i32 : i32, i32
  }
}

</mosaic_0001>

<llo_original>
// kernel: tpu_custom_call.1
$region0: #{tpu_custom_call.1}
  #allocation0 [shape = 'u32[]', space=smem, size = 0x4, offset = 0x4, fixed_abs, tag = 'smem constant byte address 0x4 - core index']
  #allocation1 [shape = 'u32[144,128]{1,0:T(1,128)}', space=vmem, size = 0x12000, scoped, tag = 'internal scratch']
  %s0 = inlined_call_operand.hbm [shape: f32[16,16], index: 0, kind: input, shape index: {}]
  %s1 = inlined_call_operand.hbm [shape: f32[16,128], index: 1, kind: input, shape index: {}]
  %s2 = inlined_call_operand.vmem [shape: f32[1,128], index: 2, kind: input, shape index: {}]
  %s3 = inlined_call_operand.hbm [shape: f32[128,512], index: 3, kind: input, shape index: {}]
  %s4 = inlined_call_operand.vmem [shape: f32[1,512], index: 4, kind: input, shape index: {}]
  %s5 = inlined_call_operand.hbm [shape: f32[512,128], index: 5, kind: input, shape index: {}]
  %s6 = inlined_call_operand.vmem [shape: f32[1,128], index: 6, kind: input, shape index: {}]
  %s7 = inlined_call_operand.hbm [shape: f32[16,128], index: 7, kind: output, shape index: {}]
  %s8 = sld [smem:[#allocation0]]
  $region54: #{tpu_custom_call.1} parent=0
    _
  %s10 = ssub.s32 1, %s8
  %s11 = scalar_select 0, %s10, %s8
  $region1: #{tpu_custom_call.1} parent=0
    #allocation2 [shape = 'u8[8192]{0}', space=vmem, size = 0x2000, scoped, tag = 'input window, operand 0, single buffered']
    #allocation3 [shape = 's32[1]{0}', space=sflag, size = 0x4, scoped, tag = 'scoped memory for tpu_custom_call.1']
    #allocation4 [shape = 's32[1]{0}', space=sflag, size = 0x4, scoped, tag = 'scoped memory for tpu_custom_call.1']
    #allocation5 [shape = 'u8[8192]{0}', space=vmem, size = 0x2000, scoped, tag = 'input window, operand 1, single buffered']
    #allocation6 [shape = 's32[1]{0}', space=sflag, size = 0x4, scoped, tag = 'scoped memory for tpu_custom_call.1']
    #allocation7 [shape = 'u8[262144]{0}', space=vmem, size = 0x40000, scoped, tag = 'input window, operand 3, single buffered']
    #allocation8 [shape = 'u8[262144]{0}', space=vmem, size = 0x40000, scoped, tag = 'input window, operand 5, single buffered']
    #allocation9 [shape = 's32[1]{0}', space=sflag, size = 0x4, scoped, tag = 'scoped memory for tpu_custom_call.1']
    #allocation10 [shape = 'u8[8192]{0}', space=vmem, size = 0x2000, scoped, tag = 'output window, operand 0, single buffered']
    %12 = vsyncpa [#allocation3], 0
    %13 = vsyncpa [#allocation6], 0
    %14 = vsyncpa [#allocation9], 0
    %15 = vsyncpa [#allocation4], 0
    // Predicated region
    $region2: #{tpu_custom_call.1} parent=1 // pred_check
      _
    $region3: #{tpu_custom_call.1} parent=1 // pred_check_branch
      %17 = sbr.rel (0) target = $region5
    $region4: #{tpu_custom_call.1} parent=1 // pred_region
      %s19 = ssub.s32 256, 256
      %20 = vsyncadd [#allocation3], %s19
      %s21 = sshll.u32 [#allocation2], 4
      %s22 = int_to_ptr.vmem [resolvable:$true] %s21
      %27 = dma.hbm_to_vmem [thread:$0]  %s0, 256, %s22, [#allocation3], 128, 128, 8
    $region5: #{tpu_custom_call.1} parent=1 // pred_fallthru
      _
    // Predicated region
    $region6: #{tpu_custom_call.1} parent=1 // pred_check
      _
    $region7: #{tpu_custom_call.1} parent=1 // pred_check_branch
      %29 = sbr.rel (0) target = $region9
    $region8: #{tpu_custom_call.1} parent=1 // pred_region
      %s31 = ssub.s32 256, 256
      %32 = vsyncadd [#allocation6], %s31
      %s33 = sshll.u32 [#allocation5], 4
      %s34 = int_to_ptr.vmem [resolvable:$true] %s33
      %39 = dma.hbm_to_vmem [thread:$0]  %s1, 256, %s34, [#allocation6], 128, 128, 8
    $region9: #{tpu_custom_call.1} parent=1 // pred_fallthru
      _
    // Predicated region
    $region10: #{tpu_custom_call.1} parent=1 // pred_check
      _
    $region11: #{tpu_custom_call.1} parent=1 // pred_check_branch
      %41 = sbr.rel (0) target = $region13
    $region12: #{tpu_custom_call.1} parent=1 // pred_region
      _
    $region13: #{tpu_custom_call.1} parent=1 // pred_fallthru
      _
    // Predicated region
    $region14: #{tpu_custom_call.1} parent=1 // pred_check
      _
    $region15: #{tpu_custom_call.1} parent=1 // pred_check_branch
      %43 = sbr.rel (0) target = $region17
    $region16: #{tpu_custom_call.1} parent=1 // pred_region
      %s45 = ssub.s32 8192, 8192
      %46 = vsyncadd [#allocation6], %s45
      %s47 = sshll.u32 [#allocation7], 4
      %s48 = int_to_ptr.vmem [resolvable:$true] %s47
      %53 = dma.hbm_to_vmem [thread:$0]  %s3, 8192, %s48, [#allocation6], 512, 512, 32
    $region17: #{tpu_custom_call.1} parent=1 // pred_fallthru
      _
    // Predicated region
    $region18: #{tpu_custom_call.1} parent=1 // pred_check
      _
    $region19: #{tpu_custom_call.1} parent=1 // pred_check_branch
      %55 = sbr.rel (0) target = $region21
    $region20: #{tpu_custom_call.1} parent=1 // pred_region
      _
    $region21: #{tpu_custom_call.1} parent=1 // pred_fallthru
      _
    // Predicated region
    $region22: #{tpu_custom_call.1} parent=1 // pred_check
      _
    $region23: #{tpu_custom_call.1} parent=1 // pred_check_branch
      %57 = sbr.rel (0) target = $region25
    $region24: #{tpu_custom_call.1} parent=1 // pred_region
      %s59 = ssub.s32 8192, 8192
      %60 = vsyncadd [#allocation9], %s59
      %s61 = sshll.u32 [#allocation8], 4
      %s62 = int_to_ptr.vmem [resolvable:$true] %s61
      %67 = dma.hbm_to_vmem [thread:$0]  %s5, 8192, %s62, [#allocation9], 128, 128, 8
    $region25: #{tpu_custom_call.1} parent=1 // pred_fallthru
      _
    // Predicated region
    $region26: #{tpu_custom_call.1} parent=1 // pred_check
      _
    $region27: #{tpu_custom_call.1} parent=1 // pred_check_branch
      %69 = sbr.rel (0) target = $region29
    $region28: #{tpu_custom_call.1} parent=1 // pred_region
      _
    $region29: #{tpu_custom_call.1} parent=1 // pred_fallthru
      _
    // Predicated region
    $region30: #{tpu_custom_call.1} parent=1 // pred_check
      _
    $region31: #{tpu_custom_call.1} parent=1 // pred_check_branch
      %71 = sbr.rel (0) target = $region33
    $region32: #{tpu_custom_call.1} parent=1 // pred_region
      %72 = dma.done [#allocation3], 256
    $region33: #{tpu_custom_call.1} parent=1 // pred_fallthru
      _
    // Predicated region
    $region34: #{tpu_custom_call.1} parent=1 // pred_check
      _
    $region35: #{tpu_custom_call.1} parent=1 // pred_check_branch
      %74 = sbr.rel (0) target = $region37
    $region36: #{tpu_custom_call.1} parent=1 // pred_region
      %75 = dma.done [#allocation6], 256
    $region37: #{tpu_custom_call.1} parent=1 // pred_fallthru
      _
    // Predicated region
    $region38: #{tpu_custom_call.1} parent=1 // pred_check
      _
    $region39: #{tpu_custom_call.1} parent=1 // pred_check_branch
      %77 = sbr.rel (0) target = $region41
    $region40: #{tpu_custom_call.1} parent=1 // pred_region
      %78 = dma.done [#allocation6], 8192
    $region41: #{tpu_custom_call.1} parent=1 // pred_fallthru
      _
    // Predicated region
    $region42: #{tpu_custom_call.1} parent=1 // pred_check
      _
    $region43: #{tpu_custom_call.1} parent=1 // pred_check_branch
      %80 = sbr.rel (0) target = $region45
    $region44: #{tpu_custom_call.1} parent=1 // pred_region
      %81 = dma.done [#allocation9], 8192
    $region45: #{tpu_custom_call.1} parent=1 // pred_fallthru
      _
    %v82 = vld [vmem:[#allocation2] sm:$0xff]
    %v83 = vld [vmem:[#allocation2 + $0x8] sm:$0xff]
    %v84 = vld [vmem:[#allocation5] sm:$0xff]
    %v85 = vld [vmem:[#allocation5 + $0x8] sm:$0xff]
    %v86 = vld [vmem:[%s2] sm:$0x1]
    %v88 = vlaneseq
    %v89 = vshrl.u32 %v88, 7
    %v90 = vsub.s32 0, %v89
    %v91 = vrot.slane %v86, %v90
    %vm93 = vcmask 130048
    %v95 = vsel %vm93, %v82, 0
    %v98 = vsel %vm93, %v83, 0
    %100 = vmatprep.subr.mxu0 0.0
    %101 = vmatpush1.msra.mxu0 %v84
    %102 = vmatprep.subr.mxu0 0.0
    %103 = vmatpush1.msra.mxu0 %v85
    %104 = vmatprep.subr.mxu0 0.0
    %105 = vmatpush1.msra.mxu0 0.0
    %106 = vmatprep.subr.mxu0 0.0
    %107 = vmatpush1.msra.mxu0 0.0
    %108 = vmatprep.subr.mxu0 0.0
    %109 = vmatpush1.msra.mxu0 0.0
    %110 = vmatprep.subr.mxu0 0.0
    %111 = vmatpush1.msra.mxu0 0.0
    %112 = vmatprep.subr.mxu0 0.0
    %113 = vmatpush1.msra.mxu0 0.0
    %114 = vmatprep.subr.mxu0 0.0
    %115 = vmatpush1.msra.mxu0 0.0
    %116 = vmatprep.subr.mxu0 0.0
    %117 = vmatpush1.msra.mxu0 0.0
    %118 = vmatprep.subr.mxu0 0.0
    %119 = vmatpush1.msra.mxu0 0.0
    %120 = vmatprep.subr.mxu0 0.0
    %121 = vmatpush1.msra.mxu0 0.0
    %122 = vmatprep.subr.mxu0 0.0
    %123 = vmatpush1.msra.mxu0 0.0
    %124 = vmatprep.subr.mxu0 0.0
    %125 = vmatpush1.msra.mxu0 0.0
    %126 = vmatprep.subr.mxu0 0.0
    %127 = vmatpush1.msra.mxu0 0.0
    %128 = vmatprep.subr.mxu0 0.0
    %129 = vmatpush1.msra.mxu0 0.0
    %130 = vmatprep.subr.mxu0 0.0
    %131 = vmatpush1.msra.mxu0 0.0
    %132 = vmatprep.subr.mxu0 0.0
    %133 = vmatpush1.msra.mxu0 0.0
    %134 = vmatprep.subr.mxu0 0.0
    %135 = vmatpush1.msra.mxu0 0.0
    %136 = vmatprep.subr.mxu0 0.0
    %137 = vmatpush1.msra.mxu0 0.0
    %138 = vmatprep.subr.mxu0 0.0
    %139 = vmatpush1.msra.mxu0 0.0
    %140 = vmatprep.subr.mxu0 0.0
    %141 = vmatpush1.msra.mxu0 0.0
    %142 = vmatprep.subr.mxu0 0.0
    %143 = vmatpush1.msra.mxu0 0.0
    %144 = vmatprep.subr.mxu0 0.0
    %145 = vmatpush1.msra.mxu0 0.0
    %146 = vmatprep.subr.mxu0 0.0
    %147 = vmatpush1.msra.mxu0 0.0
    %148 = vmatprep.subr.mxu0 0.0
    %149 = vmatpush1.msra.mxu0 0.0
    %150 = vmatprep.subr.mxu0 0.0
    %151 = vmatpush1.msra.mxu0 0.0
    %152 = vmatprep.subr.mxu0 0.0
    %153 = vmatpush1.msra.mxu0 0.0
    %154 = vmatprep.subr.mxu0 0.0
    %155 = vmatpush1.msra.mxu0 0.0
    %156 = vmatprep.subr.mxu0 0.0
    %157 = vmatpush1.msra.mxu0 0.0
    %158 = vmatprep.subr.mxu0 0.0
    %159 = vmatpush1.msra.mxu0 0.0
    %160 = vmatprep.subr.mxu0 0.0
    %161 = vmatpush1.msra.mxu0 0.0
    %162 = vmatprep.subr.mxu0 0.0
    %163 = vmatpush1.msra.mxu0 0.0
    %164 = vmatprep.mubr.f32.mxu0 0.0
    %165 = vmatmul.mubr.f32.gmra.mrb[0].mxu0 %v95
    %v166 = vpop.f32.mrb[0].mxu0
    %v167 = vadd.f32 %v91, %v166
    %v168 = vpop.f32.mrb[0].mxu0
    %169 = vmatprep.mubr.f32.mxu0 0.0
    %170 = vmatmul.mubr.f32.gmra.mrb[0].mxu0 %v98
    %v171 = vpop.f32.mrb[0].mxu0
    %v172 = vadd.f32 %v91, %v171
    %v173 = vpop.f32.mrb[0].mxu0
    %174 = vdwg.mxu0
    %v175 = vmax.f32 %v167, 0.0
    %v176 = vmax.f32 %v172, 0.0
    %v177 = vld [vmem:[#allocation7] sm:$0xff]
    %v178 = vld [vmem:[#allocation7 + $0x8] sm:$0xff]
    %v179 = vld [vmem:[#allocation7 + $0x10] sm:$0xff]
    %v180 = vld [vmem:[#allocation7 + $0x18] sm:$0xff]
    %v181 = vld [vmem:[#allocation7 + $0x20] sm:$0xff]
    %v182 = vld [vmem:[#allocation7 + $0x28] sm:$0xff]
    %v183 = vld [vmem:[#allocation7 + $0x30] sm:$0xff]
    %v184 = vld [vmem:[#allocation7 + $0x38] sm:$0xff]
    %v185 = vld [vmem:[#allocation7 + $0x40] sm:$0xff]
    %v186 = vld [vmem:[#allocation7 + $0x48] sm:$0xff]
    %v187 = vld [vmem:[#allocation7 + $0x50] sm:$0xff]
    %v188 = vld [vmem:[#allocation7 + $0x58] sm:$0xff]
    %v189 = vld [vmem:[#allocation7 + $0x60] sm:$0xff]
    %v190 = vld [vmem:[#allocation7 + $0x68] sm:$0xff]
    %v191 = vld [vmem:[#allocation7 + $0x70] sm:$0xff]
    %v192 = vld [vmem:[#allocation7 + $0x78] sm:$0xff]
    %v193 = vld [vmem:[#allocation7 + $0x80] sm:$0xff]
    %v194 = vld [vmem:[#allocation7 + $0x88] sm:$0xff]
    %v195 = vld [vmem:[#allocation7 + $0x90] sm:$0xff]
    %v196 = vld [vmem:[#allocation7 + $0x98] sm:$0xff]
    %v197 = vld [vmem:[#allocation7 + $0xa0] sm:$0xff]
    %v198 = vld [vmem:[#allocation7 + $0xa8] sm:$0xff]
    %v199 = vld [vmem:[#allocation7 + $0xb0] sm:$0xff]
    %v200 = vld [vmem:[#allocation7 + $0xb8] sm:$0xff]
    %v201 = vld [vmem:[#allocation7 + $0xc0] sm:$0xff]
    %v202 = vld [vmem:[#allocation7 + $0xc8] sm:$0xff]
    %v203 = vld [vmem:[#allocation7 + $0xd0] sm:$0xff]
    %v204 = vld [vmem:[#allocation7 + $0xd8] sm:$0xff]
    %v205 = vld [vmem:[#allocation7 + $0xe0] sm:$0xff]
    %v206 = vld [vmem:[#allocation7 + $0xe8] sm:$0xff]
    %v207 = vld [vmem:[#allocation7 + $0xf0] sm:$0xff]
    %v208 = vld [vmem:[#allocation7 + $0xf8] sm:$0xff]
    %v209 = vld [vmem:[#allocation7 + $0x100] sm:$0xff]
    %v210 = vld [vmem:[#allocation7 + $0x108] sm:$0xff]
    %v211 = vld [vmem:[#allocation7 + $0x110] sm:$0xff]
    %v212 = vld [vmem:[#allocation7 + $0x118] sm:$0xff]
    %v213 = vld [vmem:[#allocation7 + $0x120] sm:$0xff]
    %v214 = vld [vmem:[#allocation7 + $0x128] sm:$0xff]
    %v215 = vld [vmem:[#allocation7 + $0x130] sm:$0xff]
    %v216 = vld [vmem:[#allocation7 + $0x138] sm:$0xff]
    %v217 = vld [vmem:[#allocation7 + $0x140] sm:$0xff]
    %v218 = vld [vmem:[#allocation7 + $0x148] sm:$0xff]
    %v219 = vld [vmem:[#allocation7 + $0x150] sm:$0xff]
    %v220 = vld [vmem:[#allocation7 + $0x158] sm:$0xff]
    %v221 = vld [vmem:[#allocation7 + $0x160] sm:$0xff]
    %v222 = vld [vmem:[#allocation7 + $0x168] sm:$0xff]
    %v223 = vld [vmem:[#allocation7 + $0x170] sm:$0xff]
    %v224 = vld [vmem:[#allocation7 + $0x178] sm:$0xff]
    %v225 = vld [vmem:[#allocation7 + $0x180] sm:$0xff]
    %v226 = vld [vmem:[#allocation7 + $0x188] sm:$0xff]
    %v227 = vld [vmem:[#allocation7 + $0x190] sm:$0xff]
    %v228 = vld [vmem:[#allocation7 + $0x198] sm:$0xff]
    %v229 = vld [vmem:[#allocation7 + $0x1a0] sm:$0xff]
    %v230 = vld [vmem:[#allocation7 + $0x1a8] sm:$0xff]
    %v231 = vld [vmem:[#allocation7 + $0x1b0] sm:$0xff]
    %v232 = vld [vmem:[#allocation7 + $0x1b8] sm:$0xff]
    %v233 = vld [vmem:[#allocation7 + $0x1c0] sm:$0xff]
    %v234 = vld [vmem:[#allocation7 + $0x1c8] sm:$0xff]
    %v235 = vld [vmem:[#allocation7 + $0x1d0] sm:$0xff]
    %v236 = vld [vmem:[#allocation7 + $0x1d8] sm:$0xff]
    %v237 = vld [vmem:[#allocation7 + $0x1e0] sm:$0xff]
    %v238 = vld [vmem:[#allocation7 + $0x1e8] sm:$0xff]
    %v239 = vld [vmem:[#allocation7 + $0x1f0] sm:$0xff]
    %v240 = vld [vmem:[#allocation7 + $0x1f8] sm:$0xff]
    %v241 = vld [vmem:[%s4] sm:$0xf]
    %v243 = vlaneseq
    %v244 = vshrl.u32 %v243, 7
    %v245 = vsub.s32 0, %v244
    %v246 = vrot.slane %v241, %v245
    %v247 = vlaneseq
    %v248 = vshrl.u32 %v247, 7
    %v249 = vsub.s32 1, %v248
    %v250 = vrot.slane %v241, %v249
    %v251 = vlaneseq
    %v252 = vshrl.u32 %v251, 7
    %v253 = vsub.s32 2, %v252
    %v254 = vrot.slane %v241, %v253
    %v255 = vlaneseq
    %v256 = vshrl.u32 %v255, 7
    %v257 = vsub.s32 3, %v256
    %v258 = vrot.slane %v241, %v257
    %263 = vmatprep.subr.mxu0 %v178
    %264 = vmatpush1.msra.mxu0 %v177
    %265 = vmatprep.subr.mxu0 %v182
    %266 = vmatpush1.msra.mxu0 %v181
    %267 = vmatprep.subr.mxu0 %v186
    %268 = vmatpush1.msra.mxu0 %v185
    %269 = vmatprep.subr.mxu0 %v190
    %270 = vmatpush1.msra.mxu0 %v189
    %271 = vmatprep.subr.mxu0 %v194
    %272 = vmatpush1.msra.mxu0 %v193
    %273 = vmatprep.subr.mxu0 %v198
    %274 = vmatpush1.msra.mxu0 %v197
    %275 = vmatprep.subr.mxu0 %v202
    %276 = vmatpush1.msra.mxu0 %v201
    %277 = vmatprep.subr.mxu0 %v206
    %278 = vmatpush1.msra.mxu0 %v205
    %279 = vmatprep.subr.mxu0 %v210
    %280 = vmatpush1.msra.mxu0 %v209
    %281 = vmatprep.subr.mxu0 %v214
    %282 = vmatpush1.msra.mxu0 %v213
    %283 = vmatprep.subr.mxu0 %v218
    %284 = vmatpush1.msra.mxu0 %v217
    %285 = vmatprep.subr.mxu0 %v222
    %286 = vmatpush1.msra.mxu0 %v221
    %287 = vmatprep.subr.mxu0 %v226
    %288 = vmatpush1.msra.mxu0 %v225
    %289 = vmatprep.subr.mxu0 %v230
    %290 = vmatpush1.msra.mxu0 %v229
    %291 = vmatprep.subr.mxu0 %v234
    %292 = vmatpush1.msra.mxu0 %v233
    %293 = vmatprep.subr.mxu0 %v238
    %294 = vmatpush1.msra.mxu0 %v237
    %295 = vmatprep.subr.mxu0 0.0
    %296 = vmatpush1.msra.mxu0 0.0
    %297 = vmatprep.subr.mxu0 0.0
    %298 = vmatpush1.msra.mxu0 0.0
    %299 = vmatprep.subr.mxu0 0.0
    %300 = vmatpush1.msra.mxu0 0.0
    %301 = vmatprep.subr.mxu0 0.0
    %302 = vmatpush1.msra.mxu0 0.0
    %303 = vmatprep.subr.mxu0 0.0
    %304 = vmatpush1.msra.mxu0 0.0
    %305 = vmatprep.subr.mxu0 0.0
    %306 = vmatpush1.msra.mxu0 0.0
    %307 = vmatprep.subr.mxu0 0.0
    %308 = vmatpush1.msra.mxu0 0.0
    %309 = vmatprep.subr.mxu0 0.0
    %310 = vmatpush1.msra.mxu0 0.0
    %311 = vmatprep.subr.mxu0 0.0
    %312 = vmatpush1.msra.mxu0 0.0
    %313 = vmatprep.subr.mxu0 0.0
    %314 = vmatpush1.msra.mxu0 0.0
    %315 = vmatprep.subr.mxu0 0.0
    %316 = vmatpush1.msra.mxu0 0.0
    %317 = vmatprep.subr.mxu0 0.0
    %318 = vmatpush1.msra.mxu0 0.0
    %319 = vmatprep.subr.mxu0 0.0
    %320 = vmatpush1.msra.mxu0 0.0
    %321 = vmatprep.subr.mxu0 0.0
    %322 = vmatpush1.msra.mxu0 0.0
    %323 = vmatprep.subr.mxu0 0.0
    %324 = vmatpush1.msra.mxu0 0.0
    %325 = vmatprep.subr.mxu0 0.0
    %326 = vmatpush1.msra.mxu0 0.0
    %327 = vmatprep.mubr.f32.mxu0 0.0
    %328 = vmatmul.mubr.f32.gmra.mrb[0].mxu0 %v175
    %v329 = vpop.f32.mrb[0].mxu0
    %v330 = vadd.f32 %v246, %v329
    %v331 = vpop.f32.mrb[0].mxu0
    %v332 = vadd.f32 %v250, %v331
    %333 = vmatprep.mubr.f32.mxu0 0.0
    %334 = vmatmul.mubr.f32.gmra.mrb[0].mxu0 %v176
    %v335 = vpop.f32.mrb[0].mxu0
    %v336 = vadd.f32 %v246, %v335
    %v337 = vpop.f32.mrb[0].mxu0
    %v338 = vadd.f32 %v250, %v337
    %339 = vdwg.mxu0
    %340 = vmatprep.subr.mxu0 %v180
    %341 = vmatpush1.msra.mxu0 %v179
    %342 = vmatprep.subr.mxu0 %v184
    %343 = vmatpush1.msra.mxu0 %v183
    %344 = vmatprep.subr.mxu0 %v188
    %345 = vmatpush1.msra.mxu0 %v187
    %346 = vmatprep.subr.mxu0 %v192
    %347 = vmatpush1.msra.mxu0 %v191
    %348 = vmatprep.subr.mxu0 %v196
    %349 = vmatpush1.msra.mxu0 %v195
    %350 = vmatprep.subr.mxu0 %v200
    %351 = vmatpush1.msra.mxu0 %v199
    %352 = vmatprep.subr.mxu0 %v204
    %353 = vmatpush1.msra.mxu0 %v203
    %354 = vmatprep.subr.mxu0 %v208
    %355 = vmatpush1.msra.mxu0 %v207
    %356 = vmatprep.subr.mxu0 %v212
    %357 = vmatpush1.msra.mxu0 %v211
    %358 = vmatprep.subr.mxu0 %v216
    %359 = vmatpush1.msra.mxu0 %v215
    %360 = vmatprep.subr.mxu0 %v220
    %361 = vmatpush1.msra.mxu0 %v219
    %362 = vmatprep.subr.mxu0 %v224
    %363 = vmatpush1.msra.mxu0 %v223
    %364 = vmatprep.subr.mxu0 %v228
    %365 = vmatpush1.msra.mxu0 %v227
    %366 = vmatprep.subr.mxu0 %v232
    %367 = vmatpush1.msra.mxu0 %v231
    %368 = vmatprep.subr.mxu0 %v236
    %369 = vmatpush1.msra.mxu0 %v235
    %370 = vmatprep.subr.mxu0 %v240
    %371 = vmatpush1.msra.mxu0 %v239
    %372 = vmatprep.subr.mxu0 0.0
    %373 = vmatpush1.msra.mxu0 0.0
    %374 = vmatprep.subr.mxu0 0.0
    %375 = vmatpush1.msra.mxu0 0.0
    %376 = vmatprep.subr.mxu0 0.0
    %377 = vmatpush1.msra.mxu0 0.0
    %378 = vmatprep.subr.mxu0 0.0
    %379 = vmatpush1.msra.mxu0 0.0
    %380 = vmatprep.subr.mxu0 0.0
    %381 = vmatpush1.msra.mxu0 0.0
    %382 = vmatprep.subr.mxu0 0.0
    %383 = vmatpush1.msra.mxu0 0.0
    %384 = vmatprep.subr.mxu0 0.0
    %385 = vmatpush1.msra.mxu0 0.0
    %386 = vmatprep.subr.mxu0 0.0
    %387 = vmatpush1.msra.mxu0 0.0
    %388 = vmatprep.subr.mxu0 0.0
    %389 = vmatpush1.msra.mxu0 0.0
    %390 = vmatprep.subr.mxu0 0.0
    %391 = vmatpush1.msra.mxu0 0.0
    %392 = vmatprep.subr.mxu0 0.0
    %393 = vmatpush1.msra.mxu0 0.0
    %394 = vmatprep.subr.mxu0 0.0
    %395 = vmatpush1.msra.mxu0 0.0
    %396 = vmatprep.subr.mxu0 0.0
    %397 = vmatpush1.msra.mxu0 0.0
    %398 = vmatprep.subr.mxu0 0.0
    %399 = vmatpush1.msra.mxu0 0.0
    %400 = vmatprep.subr.mxu0 0.0
    %401 = vmatpush1.msra.mxu0 0.0
    %402 = vmatprep.subr.mxu0 0.0
    %403 = vmatpush1.msra.mxu0 0.0
    %404 = vmatprep.mubr.f32.mxu0 0.0
    %405 = vmatmul.mubr.f32.gmra.mrb[0].mxu0 %v175
    %v406 = vpop.f32.mrb[0].mxu0
    %v407 = vadd.f32 %v254, %v406
    %v408 = vpop.f32.mrb[0].mxu0
    %v409 = vadd.f32 %v258, %v408
    %410 = vmatprep.mubr.f32.mxu0 0.0
    %411 = vmatmul.mubr.f32.gmra.mrb[0].mxu0 %v176
    %v412 = vpop.f32.mrb[0].mxu0
    %v413 = vadd.f32 %v254, %v412
    %v414 = vpop.f32.mrb[0].mxu0
    %v415 = vadd.f32 %v258, %v414
    %416 = vdwg.mxu0
    %v417 = vmax.f32 %v330, 0.0
    %v418 = vmax.f32 %v332, 0.0
    %v419 = vmax.f32 %v407, 0.0
    %v420 = vmax.f32 %v409, 0.0
    %v421 = vmax.f32 %v336, 0.0
    %v422 = vmax.f32 %v338, 0.0
    %v423 = vmax.f32 %v413, 0.0
    %v424 = vmax.f32 %v415, 0.0
    %v425 = vld [vmem:[#allocation8] sm:$0xff]
    %v426 = vld [vmem:[#allocation8 + $0x8] sm:$0xff]
    %v427 = vld [vmem:[#allocation8 + $0x10] sm:$0xff]
    %v428 = vld [vmem:[#allocation8 + $0x18] sm:$0xff]
    %v429 = vld [vmem:[#allocation8 + $0x20] sm:$0xff]
    %v430 = vld [vmem:[#allocation8 + $0x28] sm:$0xff]
    %v431 = vld [vmem:[#allocation8 + $0x30] sm:$0xff]
    %v432 = vld [vmem:[#allocation8 + $0x38] sm:$0xff]
    %v433 = vld [vmem:[#allocation8 + $0x40] sm:$0xff]
    %v434 = vld [vmem:[#allocation8 + $0x48] sm:$0xff]
    %v435 = vld [vmem:[#allocation8 + $0x50] sm:$0xff]
    %v436 = vld [vmem:[#allocation8 + $0x58] sm:$0xff]
    %v437 = vld [vmem:[#allocation8 + $0x60] sm:$0xff]
    %v438 = vld [vmem:[#allocation8 + $0x68] sm:$0xff]
    %v439 = vld [vmem:[#allocation8 + $0x70] sm:$0xff]
    %v440 = vld [vmem:[#allocation8 + $0x78] sm:$0xff]
    %v441 = vld [vmem:[#allocation8 + $0x80] sm:$0xff]
    %v442 = vld [vmem:[#allocation8 + $0x88] sm:$0xff]
    %v443 = vld [vmem:[#allocation8 + $0x90] sm:$0xff]
    %v444 = vld [vmem:[#allocation8 + $0x98] sm:$0xff]
    %v445 = vld [vmem:[#allocation8 + $0xa0] sm:$0xff]
    %v446 = vld [vmem:[#allocation8 + $0xa8] sm:$0xff]
    %v447 = vld [vmem:[#allocation8 + $0xb0] sm:$0xff]
    %v448 = vld [vmem:[#allocation8 + $0xb8] sm:$0xff]
    %v449 = vld [vmem:[#allocation8 + $0xc0] sm:$0xff]
    %v450 = vld [vmem:[#allocation8 + $0xc8] sm:$0xff]
    %v451 = vld [vmem:[#allocation8 + $0xd0] sm:$0xff]
    %v452 = vld [vmem:[#allocation8 + $0xd8] sm:$0xff]
    %v453 = vld [vmem:[#allocation8 + $0xe0] sm:$0xff]
    %v454 = vld [vmem:[#allocation8 + $0xe8] sm:$0xff]
    %v455 = vld [vmem:[#allocation8 + $0xf0] sm:$0xff]
    %v456 = vld [vmem:[#allocation8 + $0xf8] sm:$0xff]
    %v457 = vld [vmem:[#allocation8 + $0x100] sm:$0xff]
    %v458 = vld [vmem:[#allocation8 + $0x108] sm:$0xff]
    %v459 = vld [vmem:[#allocation8 + $0x110] sm:$0xff]
    %v460 = vld [vmem:[#allocation8 + $0x118] sm:$0xff]
    %v461 = vld [vmem:[#allocation8 + $0x120] sm:$0xff]
    %v462 = vld [vmem:[#allocation8 + $0x128] sm:$0xff]
    %v463 = vld [vmem:[#allocation8 + $0x130] sm:$0xff]
    %v464 = vld [vmem:[#allocation8 + $0x138] sm:$0xff]
    %v465 = vld [vmem:[#allocation8 + $0x140] sm:$0xff]
    %v466 = vld [vmem:[#allocation8 + $0x148] sm:$0xff]
    %v467 = vld [vmem:[#allocation8 + $0x150] sm:$0xff]
    %v468 = vld [vmem:[#allocation8 + $0x158] sm:$0xff]
    %v469 = vld [vmem:[#allocation8 + $0x160] sm:$0xff]
    %v470 = vld [vmem:[#allocation8 + $0x168] sm:$0xff]
    %v471 = vld [vmem:[#allocation8 + $0x170] sm:$0xff]
    %v472 = vld [vmem:[#allocation8 + $0x178] sm:$0xff]
    %v473 = vld [vmem:[#allocation8 + $0x180] sm:$0xff]
    %v474 = vld [vmem:[#allocation8 + $0x188] sm:$0xff]
    %v475 = vld [vmem:[#allocation8 + $0x190] sm:$0xff]
    %v476 = vld [vmem:[#allocation8 + $0x198] sm:$0xff]
    %v477 = vld [vmem:[#allocation8 + $0x1a0] sm:$0xff]
    %v478 = vld [vmem:[#allocation8 + $0x1a8] sm:$0xff]
    %v479 = vld [vmem:[#allocation8 + $0x1b0] sm:$0xff]
    %v480 = vld [vmem:[#allocation8 + $0x1b8] sm:$0xff]
    %v481 = vld [vmem:[#allocation8 + $0x1c0] sm:$0xff]
    %v482 = vld [vmem:[#allocation8 + $0x1c8] sm:$0xff]
    %v483 = vld [vmem:[#allocation8 + $0x1d0] sm:$0xff]
    %v484 = vld [vmem:[#allocation8 + $0x1d8] sm:$0xff]
    %v485 = vld [vmem:[#allocation8 + $0x1e0] sm:$0xff]
    %v486 = vld [vmem:[#allocation8 + $0x1e8] sm:$0xff]
    %v487 = vld [vmem:[#allocation8 + $0x1f0] sm:$0xff]
    %v488 = vld [vmem:[#allocation8 + $0x1f8] sm:$0xff]
    %v489 = vld [vmem:[%s6] sm:$0x1]
    %v491 = vlaneseq
    %v492 = vshrl.u32 %v491, 7
    %v493 = vsub.s32 0, %v492
    %v494 = vrot.slane %v489, %v493
    %496 = vmatprep.subr.mxu0 0.0
    %497 = vmatpush1.msra.mxu0 %v425
    %498 = vmatprep.subr.mxu0 0.0
    %499 = vmatpush1.msra.mxu0 %v426
    %500 = vmatprep.subr.mxu0 0.0
    %501 = vmatpush1.msra.mxu0 %v427
    %502 = vmatprep.subr.mxu0 0.0
    %503 = vmatpush1.msra.mxu0 %v428
    %504 = vmatprep.subr.mxu0 0.0
    %505 = vmatpush1.msra.mxu0 %v429
    %506 = vmatprep.subr.mxu0 0.0
    %507 = vmatpush1.msra.mxu0 %v430
    %508 = vmatprep.subr.mxu0 0.0
    %509 = vmatpush1.msra.mxu0 %v431
    %510 = vmatprep.subr.mxu0 0.0
    %511 = vmatpush1.msra.mxu0 %v432
    %512 = vmatprep.subr.mxu0 0.0
    %513 = vmatpush1.msra.mxu0 %v433
    %514 = vmatprep.subr.mxu0 0.0
    %515 = vmatpush1.msra.mxu0 %v434
    %516 = vmatprep.subr.mxu0 0.0
    %517 = vmatpush1.msra.mxu0 %v435
    %518 = vmatprep.subr.mxu0 0.0
    %519 = vmatpush1.msra.mxu0 %v436
    %520 = vmatprep.subr.mxu0 0.0
    %521 = vmatpush1.msra.mxu0 %v437
    %522 = vmatprep.subr.mxu0 0.0
    %523 = vmatpush1.msra.mxu0 %v438
    %524 = vmatprep.subr.mxu0 0.0
    %525 = vmatpush1.msra.mxu0 %v439
    %526 = vmatprep.subr.mxu0 0.0
    %527 = vmatpush1.msra.mxu0 %v440
    %528 = vmatprep.subr.mxu0 0.0
    %529 = vmatpush1.msra.mxu0 %v441
    %530 = vmatprep.subr.mxu0 0.0
    %531 = vmatpush1.msra.mxu0 %v442
    %532 = vmatprep.subr.mxu0 0.0
    %533 = vmatpush1.msra.mxu0 %v443
    %534 = vmatprep.subr.mxu0 0.0
    %535 = vmatpush1.msra.mxu0 %v444
    %536 = vmatprep.subr.mxu0 0.0
    %537 = vmatpush1.msra.mxu0 %v445
    %538 = vmatprep.subr.mxu0 0.0
    %539 = vmatpush1.msra.mxu0 %v446
    %540 = vmatprep.subr.mxu0 0.0
    %541 = vmatpush1.msra.mxu0 %v447
    %542 = vmatprep.subr.mxu0 0.0
    %543 = vmatpush1.msra.mxu0 %v448
    %544 = vmatprep.subr.mxu0 0.0
    %545 = vmatpush1.msra.mxu0 %v449
    %546 = vmatprep.subr.mxu0 0.0
    %547 = vmatpush1.msra.mxu0 %v450
    %548 = vmatprep.subr.mxu0 0.0
    %549 = vmatpush1.msra.mxu0 %v451
    %550 = vmatprep.subr.mxu0 0.0
    %551 = vmatpush1.msra.mxu0 %v452
    %552 = vmatprep.subr.mxu0 0.0
    %553 = vmatpush1.msra.mxu0 %v453
    %554 = vmatprep.subr.mxu0 0.0
    %555 = vmatpush1.msra.mxu0 %v454
    %556 = vmatprep.subr.mxu0 0.0
    %557 = vmatpush1.msra.mxu0 %v455
    %558 = vmatprep.subr.mxu0 0.0
    %559 = vmatpush1.msra.mxu0 %v456
    %560 = vmatprep.mubr.f32.mxu0 %v418
    %561 = vmatmul.mubr.f32.gmra.mrb[0].mxu0 %v417
    %v562 = vpop.f32.mrb[0].mxu0
    %v563 = vadd.f32 %v494, %v562
    %v564 = vpop.f32.mrb[0].mxu0
    %565 = vmatprep.mubr.f32.mxu0 %v422
    %566 = vmatmul.mubr.f32.gmra.mrb[0].mxu0 %v421
    %v567 = vpop.f32.mrb[0].mxu0
    %v568 = vadd.f32 %v494, %v567
    %v569 = vpop.f32.mrb[0].mxu0
    %570 = vdwg.mxu0
    %571 = vmatprep.subr.mxu0 0.0
    %572 = vmatpush1.msra.mxu0 %v457
    %573 = vmatprep.subr.mxu0 0.0
    %574 = vmatpush1.msra.mxu0 %v458
    %575 = vmatprep.subr.mxu0 0.0
    %576 = vmatpush1.msra.mxu0 %v459
    %577 = vmatprep.subr.mxu0 0.0
    %578 = vmatpush1.msra.mxu0 %v460
    %579 = vmatprep.subr.mxu0 0.0
    %580 = vmatpush1.msra.mxu0 %v461
    %581 = vmatprep.subr.mxu0 0.0
    %582 = vmatpush1.msra.mxu0 %v462
    %583 = vmatprep.subr.mxu0 0.0
    %584 = vmatpush1.msra.mxu0 %v463
    %585 = vmatprep.subr.mxu0 0.0
    %586 = vmatpush1.msra.mxu0 %v464
    %587 = vmatprep.subr.mxu0 0.0
    %588 = vmatpush1.msra.mxu0 %v465
    %589 = vmatprep.subr.mxu0 0.0
    %590 = vmatpush1.msra.mxu0 %v466
    %591 = vmatprep.subr.mxu0 0.0
    %592 = vmatpush1.msra.mxu0 %v467
    %593 = vmatprep.subr.mxu0 0.0
    %594 = vmatpush1.msra.mxu0 %v468
    %595 = vmatprep.subr.mxu0 0.0
    %596 = vmatpush1.msra.mxu0 %v469
    %597 = vmatprep.subr.mxu0 0.0
    %598 = vmatpush1.msra.mxu0 %v470
    %599 = vmatprep.subr.mxu0 0.0
    %600 = vmatpush1.msra.mxu0 %v471
    %601 = vmatprep.subr.mxu0 0.0
    %602 = vmatpush1.msra.mxu0 %v472
    %603 = vmatprep.subr.mxu0 0.0
    %604 = vmatpush1.msra.mxu0 %v473
    %605 = vmatprep.subr.mxu0 0.0
    %606 = vmatpush1.msra.mxu0 %v474
    %607 = vmatprep.subr.mxu0 0.0
    %608 = vmatpush1.msra.mxu0 %v475
    %609 = vmatprep.subr.mxu0 0.0
    %610 = vmatpush1.msra.mxu0 %v476
    %611 = vmatprep.subr.mxu0 0.0
    %612 = vmatpush1.msra.mxu0 %v477
    %613 = vmatprep.subr.mxu0 0.0
    %614 = vmatpush1.msra.mxu0 %v478
    %615 = vmatprep.subr.mxu0 0.0
    %616 = vmatpush1.msra.mxu0 %v479
    %617 = vmatprep.subr.mxu0 0.0
    %618 = vmatpush1.msra.mxu0 %v480
    %619 = vmatprep.subr.mxu0 0.0
    %620 = vmatpush1.msra.mxu0 %v481
    %621 = vmatprep.subr.mxu0 0.0
    %622 = vmatpush1.msra.mxu0 %v482
    %623 = vmatprep.subr.mxu0 0.0
    %624 = vmatpush1.msra.mxu0 %v483
    %625 = vmatprep.subr.mxu0 0.0
    %626 = vmatpush1.msra.mxu0 %v484
    %627 = vmatprep.subr.mxu0 0.0
    %628 = vmatpush1.msra.mxu0 %v485
    %629 = vmatprep.subr.mxu0 0.0
    %630 = vmatpush1.msra.mxu0 %v486
    %631 = vmatprep.subr.mxu0 0.0
    %632 = vmatpush1.msra.mxu0 %v487
    %633 = vmatprep.subr.mxu0 0.0
    %634 = vmatpush1.msra.mxu0 %v488
    %635 = vmatprep.mubr.f32.mxu0 %v420
    %636 = vmatmul.mubr.f32.gmra.mrb[0].mxu0 %v419
    %v637 = vpop.f32.mrb[0].mxu0
    %v638 = vadd.f32 %v563, %v637
    %v639 = vpop.f32.mrb[0].mxu0
    %640 = vmatprep.mubr.f32.mxu0 %v424
    %641 = vmatmul.mubr.f32.gmra.mrb[0].mxu0 %v423
    %v642 = vpop.f32.mrb[0].mxu0
    %v643 = vadd.f32 %v568, %v642
    %v644 = vpop.f32.mrb[0].mxu0
    %645 = vdwg.mxu0
    %646 = vst [vmem:[#allocation10] sm:$0xff] %v638
    %647 = vst [vmem:[#allocation10 + $0x8] sm:$0xff] %v643
    // Predicated region
    $region46: #{tpu_custom_call.1} parent=1 // pred_check
      _
    $region47: #{tpu_custom_call.1} parent=1 // pred_check_branch
      %649 = sbr.rel (0) target = $region49
    $region48: #{tpu_custom_call.1} parent=1 // pred_region
      %s651 = ssub.s32 256, 256
      %652 = vsyncadd [#allocation4], %s651
      %s653 = sshll.u32 [#allocation10], 4
      %s654 = int_to_ptr.vmem [resolvable:$true] %s653
      %659 = dma.vmem_to_hbm [thread:$0]  %s654, 256, %s7, [#allocation4], 128, 128, 8
    $region49: #{tpu_custom_call.1} parent=1 // pred_fallthru
      _
    // Predicated region
    $region50: #{tpu_custom_call.1} parent=1 // pred_check
      _
    $region51: #{tpu_custom_call.1} parent=1 // pred_check_branch
      %661 = sbr.rel (0) target = $region53
    $region52: #{tpu_custom_call.1} parent=1 // pred_region
      %662 = dma.done [#allocation4], 256
    $region53: #{tpu_custom_call.1} parent=1 // pred_fallthru
      _
    %663 = vsyncpa [#allocation3], 1
    %664 = vsyncpa [#allocation6], 1
    %665 = vsyncpa [#allocation9], 1
    %666 = vsyncpa [#allocation4], 1

</llo_original>
